<compile_context>
chip_gen: v7x
topology: tpu7x:2x2x1
jax: 0.10.0
libtpu: 0.0.40
codegen_flags: <defaults>
</compile_context>

<pallas_src>
import functools

import jax
import jax.numpy as jnp
from jax import lax
from jax.experimental import pallas as pl
from jax.experimental.pallas import tpu as pltpu


def _lane_shift_wrap(v, offset):
    """Static circular lane shift of a 2-D value: result[:, p] = v[:, (p+offset) % L].

    Implemented as two static lane slices + one concatenate so it stays a pure
    vreg relayout with unambiguous semantics (wrapped lanes are don't-care here:
    the caller masks them out).  pltpu.roll(v, -offset, 1) is the single-XLU-op
    equivalent.
    """
    L = v.shape[-1]
    k = offset % L
    if k == 0:
        return v
    return jnp.concatenate([v[:, k:], v[:, :k]], axis=1)


def _color_head_kernel(x_ref, w_ref, b_ref, o_ref, *, H, W, C_OUT):
    """One grid step processes NB images, accumulating entirely in vregs.

    x_ref : (NB, C, H*W)        VMEM  NCHW-flat activations (no padding)
    w_ref : (C_OUT*9, C)        VMEM  conv weights, rows ordered (co, ky, kx)
    b_ref : (1, C_OUT*H*W)      VMEM  bias pre-broadcast over each channel plane
    o_ref : (1, NB, C_OUT*H*W)  VMEM  flat, lane-dense output block
    """
    NB = x_ref.shape[0]
    HW = H * W
    L = C_OUT * HW

    # Flat-lane spatial coordinates of the [co, r, c] output layout; built once.
    lane = lax.broadcasted_iota(jnp.int32, (1, L), 1)
    if (W & (W - 1)) == 0 and (HW & (HW - 1)) == 0:
        # Power-of-two fast path: bit-ops only (no vector integer div/rem).
        hw = lane & (HW - 1)
        col = lane & (W - 1)
    else:  # not exercised at the test shape
        hw = lane % HW
        col = hw % W

    # "Same"-padding validity masks for the 8 shifted taps (zero contribution where
    # the 3x3 window sticks out of the image).  Computed once, shared across NB.
    masks = {}
    for ky in range(3):
        for kx in range(3):
            if ky == 1 and kx == 1:
                continue
            dy, dx = ky - 1, kx - 1
            masks[(ky, kx)] = ((hw + dy * W >= 0) & (hw + dy * W < HW)
                               & (col + dx >= 0) & (col + dx < W))

    w = w_ref[...]                      # (C_OUT*9, C)
    b = b_ref[...]                      # (1, L)

    for n in range(NB):                 # NB is 1 or 2: static unroll
        # One MXU matmul per image: all 9 taps x all output channels at once.
        # (Default dot precision matches the previously validated 1e-4 parity;
        #  pin precision=lax.Precision.HIGHEST if exact f32 parity is required.)
        t = jnp.dot(w, x_ref[n], preferred_element_type=jnp.float32)   # (C_OUT*9, HW)

        # Pack the per-channel tap planes side by side along lanes: row g of t2 is
        # [tap-g plane co=0 | tap-g plane co=1], i.e. 128 lanes.  Everything below
        # then runs at full lane width and the final store needs no relayout.
        t2 = jnp.concatenate(
            [t[co * 9:(co + 1) * 9, :] for co in range(C_OUT)], axis=1)  # (9, L)

        # kn2row shift-add in vregs: init from the centre tap (no shift, always
        # valid); each other tap is lane-shifted and masked.  Cross-channel /
        # wrap-around lanes introduced by the shift are exactly the masked ones.
        acc = t2[4:5, :]                                   # ky = kx = 1
        for (ky, kx), valid in masks.items():
            g = ky * 3 + kx
            s = (ky - 1) * W + (kx - 1)                    # out[p] needs tap[p + s]
            shifted = _lane_shift_wrap(t2[g:g + 1, :], s)
            acc = acc + jnp.where(valid, shifted, 0.0)

        # Epilogue: bias (pre-broadcast) + sigmoid, one unmasked 128-lane store.
        o_ref[0, n:n + 1, :] = jax.nn.sigmoid(acc + b).astype(o_ref.dtype)


def _tensorcore_split(n_batch: int) -> int:
    """Grid steps: 1 on single-TC chips (v5e/v6e); 2 only where two TensorCores
    can genuinely split the batch (megacore v4/v5p, v7x)."""
    if n_batch < 2 or n_batch % 2 != 0:
        return 1
    try:
        kind = jax.devices()[0].device_kind.lower()
    except Exception:
        return 1
    if ("lite" in kind) or ("v5e" in kind) or ("v6" in kind):
        return 1
    # NOTE: on v7x, confirm in a trace that "parallel" actually shards the two
    # steps across both TensorCores; otherwise fall back to a single step.
    if any(tag in kind for tag in ("v4", "v5p", "v7")):
        return 2
    return 1


@jax.jit
def color_head_forward(x_nchw, weight, bias):
    """colorHead forward: sigmoid(conv2d(x, weight, bias, k=3, pad=1)).

    x_nchw : (N, C_in, H, W)     float32 (PyTorch NCHW)
    weight : (C_out, C_in, 3, 3) float32 (PyTorch OIHW)
    bias   : (C_out,)            float32
    returns: (N, C_out, H, W)    float32 (NCHW)
    """
    N, C, H, W = x_nchw.shape
    C_OUT = weight.shape[0]
    HW = H * W
    L = C_OUT * HW
    KK = C_OUT * 9

    G = _tensorcore_split(N)
    NB = N // G

    # Free contiguous reshape of the activation (no transpose, no pad HBM passes).
    x_flat = x_nchw.reshape(N, C, HW)                                  # (N, C, H*W)
    # Tiny weight relayout (C_OUT*9*C floats); rows ordered (co, ky, kx).
    w_flat = jnp.transpose(weight, (0, 2, 3, 1)).reshape(KK, C)        # (18, C)
    # Bias pre-broadcast to the flat [co, hw] lane layout (C_OUT*H*W floats).
    b_flat = jnp.repeat(bias, HW).reshape(1, L)                        # (1, 128)

    kernel = functools.partial(_color_head_kernel, H=H, W=W, C_OUT=C_OUT)

    out_flat = pl.pallas_call(
        kernel,
        out_shape=jax.ShapeDtypeStruct((G, NB, L), x_nchw.dtype),
        grid_spec=pltpu.PrefetchScalarGridSpec(
            num_scalar_prefetch=0,
            grid=(G,),
            in_specs=[
                pl.BlockSpec((NB, C, HW), lambda g: (g, 0, 0)),        # activations
                pl.BlockSpec((KK, C), lambda g: (0, 0)),               # weights
                pl.BlockSpec((1, L), lambda g: (0, 0)),                # bias row
            ],
            out_specs=pl.BlockSpec((1, NB, L), lambda g: (g, 0, 0)),
        ),
        compiler_params=pltpu.CompilerParams(
            dimension_semantics=("parallel",),
        ),
        cost_estimate=pl.CostEstimate(
            flops=2 * N * KK * C * HW,
            transcendentals=N * C_OUT * HW,
            bytes_accessed=4 * (x_flat.size + w_flat.size + b_flat.size + N * L),
        ),
    )(x_flat, w_flat, b_flat)

    # (G, NB, C_out*H*W) -> (N, C_out, H, W): contiguous reshape, no data movement.
    return out_flat.reshape(N, C_OUT, H, W)


def _reference_forward(x_nchw, weight, bias):
    """Plain-JAX reference (same math as PyTorch Conv2d + Sigmoid)."""
    y = lax.conv_general_dilated(
        x_nchw, weight,
        window_strides=(1, 1),
        padding=((1, 1), (1, 1)),
        dimension_numbers=("NCHW", "OIHW", "NCHW"),
    )
    return jax.nn.sigmoid(y + bias.reshape(1, -1, 1, 1))


if __name__ == "__main__":
    # backbone == 'resnet18'  ->  Conv2d(256, 2, k=3, pad=1, bias=True)
    C_IN, C_OUT, K = 256, 2, 3
    N, H, W = 2, 8, 8

    key = jax.random.PRNGKey(0)
    kx_, kw_, kb_ = jax.random.split(key, 3)
    x = jax.random.normal(kx_, (N, C_IN, H, W), dtype=jnp.float32)
    weight = jax.random.normal(kw_, (C_OUT, C_IN, K, K), dtype=jnp.float32) * 0.02
    bias = jax.random.normal(kb_, (C_OUT,), dtype=jnp.float32) * 0.1

    out = jax.block_until_ready(color_head_forward(x, weight, bias))
    ref = jax.block_until_ready(_reference_forward(x, weight, bias))

    assert out.shape == (N, C_OUT, H, W), out.shape
    max_err = float(jnp.max(jnp.abs(out - ref)))
    assert max_err < 1e-4, max_err
    print("KERNEL_OK")
</pallas_src>

<mosaic_0001>
module attributes {stable_mosaic.version = 11 : i64} {
  func.func @_color_head_kernel(%arg0: i32, %arg1: memref<2x256x64xf32, #tpu.memory_space<vmem>>, %arg2: memref<18x256xf32, #tpu.memory_space<vmem>>, %arg3: memref<1x128xf32, #tpu.memory_space<vmem>>, %arg4: memref<1x2x128xf32, #tpu.memory_space<vmem>>) attributes {dimension_semantics = [#tpu.dimension_semantics<parallel>], iteration_bounds = array<i64: 1>, scalar_prefetch = 0 : i64, scratch_operands = 0 : i64, tpu.core_type = #tpu.core_type<tc>, window_params = [{transform_indices = @transform_0, window_bounds = array<i64: 2, 256, 64>}, {pipeline_mode = #tpu.pipeline_mode<synchronous>, transform_indices = @transform_1, window_bounds = array<i64: 18, 256>}, {pipeline_mode = #tpu.pipeline_mode<synchronous>, transform_indices = @transform_2, window_bounds = array<i64: 1, 128>}, {transform_indices = @transform_3, window_bounds = array<i64: 1, 2, 128>}]} {
    %0 = tpu.iota {dimensions = array<i32: 1>} : vector<1x128xi32>
    %c63_i32 = arith.constant 63 : i32
    %1 = vector.broadcast %c63_i32 : i32 to vector<1x128xi32>
    %2 = arith.andi %0, %1 : vector<1x128xi32>
    %c7_i32 = arith.constant 7 : i32
    %3 = vector.broadcast %c7_i32 : i32 to vector<1x128xi32>
    %4 = arith.andi %0, %3 : vector<1x128xi32>
    %c-8_i32 = arith.constant -8 : i32
    %5 = vector.broadcast %c-8_i32 : i32 to vector<1x128xi32>
    %6 = arith.addi %2, %5 : vector<1x128xi32>
    %c0_i32 = arith.constant 0 : i32
    %7 = vector.broadcast %c0_i32 : i32 to vector<1x128xi32>
    %8 = arith.cmpi sge, %6, %7 : vector<1x128xi32>
    %c-8_i32_0 = arith.constant -8 : i32
    %9 = vector.broadcast %c-8_i32_0 : i32 to vector<1x128xi32>
    %10 = arith.addi %2, %9 : vector<1x128xi32>
    %c64_i32 = arith.constant 64 : i32
    %11 = vector.broadcast %c64_i32 : i32 to vector<1x128xi32>
    %12 = arith.cmpi slt, %10, %11 : vector<1x128xi32>
    %13 = arith.andi %8, %12 : vector<1x128xi1>
    %c-1_i32 = arith.constant -1 : i32
    %14 = vector.broadcast %c-1_i32 : i32 to vector<1x128xi32>
    %15 = arith.addi %4, %14 : vector<1x128xi32>
    %c0_i32_1 = arith.constant 0 : i32
    %16 = vector.broadcast %c0_i32_1 : i32 to vector<1x128xi32>
    %17 = arith.cmpi sge, %15, %16 : vector<1x128xi32>
    %18 = arith.andi %13, %17 : vector<1x128xi1>
    %c-1_i32_2 = arith.constant -1 : i32
    %19 = vector.broadcast %c-1_i32_2 : i32 to vector<1x128xi32>
    %20 = arith.addi %4, %19 : vector<1x128xi32>
    %c8_i32 = arith.constant 8 : i32
    %21 = vector.broadcast %c8_i32 : i32 to vector<1x128xi32>
    %22 = arith.cmpi slt, %20, %21 : vector<1x128xi32>
    %23 = arith.andi %18, %22 : vector<1x128xi1>
    %c-8_i32_3 = arith.constant -8 : i32
    %24 = vector.broadcast %c-8_i32_3 : i32 to vector<1x128xi32>
    %25 = arith.addi %2, %24 : vector<1x128xi32>
    %c0_i32_4 = arith.constant 0 : i32
    %26 = vector.broadcast %c0_i32_4 : i32 to vector<1x128xi32>
    %27 = arith.cmpi sge, %25, %26 : vector<1x128xi32>
    %c-8_i32_5 = arith.constant -8 : i32
    %28 = vector.broadcast %c-8_i32_5 : i32 to vector<1x128xi32>
    %29 = arith.addi %2, %28 : vector<1x128xi32>
    %c64_i32_6 = arith.constant 64 : i32
    %30 = vector.broadcast %c64_i32_6 : i32 to vector<1x128xi32>
    %31 = arith.cmpi slt, %29, %30 : vector<1x128xi32>
    %32 = arith.andi %27, %31 : vector<1x128xi1>
    %c0_i32_7 = arith.constant 0 : i32
    %33 = vector.broadcast %c0_i32_7 : i32 to vector<1x128xi32>
    %34 = arith.addi %4, %33 : vector<1x128xi32>
    %c0_i32_8 = arith.constant 0 : i32
    %35 = vector.broadcast %c0_i32_8 : i32 to vector<1x128xi32>
    %36 = arith.cmpi sge, %34, %35 : vector<1x128xi32>
    %37 = arith.andi %32, %36 : vector<1x128xi1>
    %c0_i32_9 = arith.constant 0 : i32
    %38 = vector.broadcast %c0_i32_9 : i32 to vector<1x128xi32>
    %39 = arith.addi %4, %38 : vector<1x128xi32>
    %c8_i32_10 = arith.constant 8 : i32
    %40 = vector.broadcast %c8_i32_10 : i32 to vector<1x128xi32>
    %41 = arith.cmpi slt, %39, %40 : vector<1x128xi32>
    %42 = arith.andi %37, %41 : vector<1x128xi1>
    %c-8_i32_11 = arith.constant -8 : i32
    %43 = vector.broadcast %c-8_i32_11 : i32 to vector<1x128xi32>
    %44 = arith.addi %2, %43 : vector<1x128xi32>
    %c0_i32_12 = arith.constant 0 : i32
    %45 = vector.broadcast %c0_i32_12 : i32 to vector<1x128xi32>
    %46 = arith.cmpi sge, %44, %45 : vector<1x128xi32>
    %c-8_i32_13 = arith.constant -8 : i32
    %47 = vector.broadcast %c-8_i32_13 : i32 to vector<1x128xi32>
    %48 = arith.addi %2, %47 : vector<1x128xi32>
    %c64_i32_14 = arith.constant 64 : i32
    %49 = vector.broadcast %c64_i32_14 : i32 to vector<1x128xi32>
    %50 = arith.cmpi slt, %48, %49 : vector<1x128xi32>
    %51 = arith.andi %46, %50 : vector<1x128xi1>
    %c1_i32 = arith.constant 1 : i32
    %52 = vector.broadcast %c1_i32 : i32 to vector<1x128xi32>
    %53 = arith.addi %4, %52 : vector<1x128xi32>
    %c0_i32_15 = arith.constant 0 : i32
    %54 = vector.broadcast %c0_i32_15 : i32 to vector<1x128xi32>
    %55 = arith.cmpi sge, %53, %54 : vector<1x128xi32>
    %56 = arith.andi %51, %55 : vector<1x128xi1>
    %c1_i32_16 = arith.constant 1 : i32
    %57 = vector.broadcast %c1_i32_16 : i32 to vector<1x128xi32>
    %58 = arith.addi %4, %57 : vector<1x128xi32>
    %c8_i32_17 = arith.constant 8 : i32
    %59 = vector.broadcast %c8_i32_17 : i32 to vector<1x128xi32>
    %60 = arith.cmpi slt, %58, %59 : vector<1x128xi32>
    %61 = arith.andi %56, %60 : vector<1x128xi1>
    %c0_i32_18 = arith.constant 0 : i32
    %62 = vector.broadcast %c0_i32_18 : i32 to vector<1x128xi32>
    %63 = arith.addi %2, %62 : vector<1x128xi32>
    %c0_i32_19 = arith.constant 0 : i32
    %64 = vector.broadcast %c0_i32_19 : i32 to vector<1x128xi32>
    %65 = arith.cmpi sge, %63, %64 : vector<1x128xi32>
    %c0_i32_20 = arith.constant 0 : i32
    %66 = vector.broadcast %c0_i32_20 : i32 to vector<1x128xi32>
    %67 = arith.addi %2, %66 : vector<1x128xi32>
    %c64_i32_21 = arith.constant 64 : i32
    %68 = vector.broadcast %c64_i32_21 : i32 to vector<1x128xi32>
    %69 = arith.cmpi slt, %67, %68 : vector<1x128xi32>
    %70 = arith.andi %65, %69 : vector<1x128xi1>
    %c-1_i32_22 = arith.constant -1 : i32
    %71 = vector.broadcast %c-1_i32_22 : i32 to vector<1x128xi32>
    %72 = arith.addi %4, %71 : vector<1x128xi32>
    %c0_i32_23 = arith.constant 0 : i32
    %73 = vector.broadcast %c0_i32_23 : i32 to vector<1x128xi32>
    %74 = arith.cmpi sge, %72, %73 : vector<1x128xi32>
    %75 = arith.andi %70, %74 : vector<1x128xi1>
    %c-1_i32_24 = arith.constant -1 : i32
    %76 = vector.broadcast %c-1_i32_24 : i32 to vector<1x128xi32>
    %77 = arith.addi %4, %76 : vector<1x128xi32>
    %c8_i32_25 = arith.constant 8 : i32
    %78 = vector.broadcast %c8_i32_25 : i32 to vector<1x128xi32>
    %79 = arith.cmpi slt, %77, %78 : vector<1x128xi32>
    %80 = arith.andi %75, %79 : vector<1x128xi1>
    %c0_i32_26 = arith.constant 0 : i32
    %81 = vector.broadcast %c0_i32_26 : i32 to vector<1x128xi32>
    %82 = arith.addi %2, %81 : vector<1x128xi32>
    %c0_i32_27 = arith.constant 0 : i32
    %83 = vector.broadcast %c0_i32_27 : i32 to vector<1x128xi32>
    %84 = arith.cmpi sge, %82, %83 : vector<1x128xi32>
    %c0_i32_28 = arith.constant 0 : i32
    %85 = vector.broadcast %c0_i32_28 : i32 to vector<1x128xi32>
    %86 = arith.addi %2, %85 : vector<1x128xi32>
    %c64_i32_29 = arith.constant 64 : i32
    %87 = vector.broadcast %c64_i32_29 : i32 to vector<1x128xi32>
    %88 = arith.cmpi slt, %86, %87 : vector<1x128xi32>
    %89 = arith.andi %84, %88 : vector<1x128xi1>
    %c1_i32_30 = arith.constant 1 : i32
    %90 = vector.broadcast %c1_i32_30 : i32 to vector<1x128xi32>
    %91 = arith.addi %4, %90 : vector<1x128xi32>
    %c0_i32_31 = arith.constant 0 : i32
    %92 = vector.broadcast %c0_i32_31 : i32 to vector<1x128xi32>
    %93 = arith.cmpi sge, %91, %92 : vector<1x128xi32>
    %94 = arith.andi %89, %93 : vector<1x128xi1>
    %c1_i32_32 = arith.constant 1 : i32
    %95 = vector.broadcast %c1_i32_32 : i32 to vector<1x128xi32>
    %96 = arith.addi %4, %95 : vector<1x128xi32>
    %c8_i32_33 = arith.constant 8 : i32
    %97 = vector.broadcast %c8_i32_33 : i32 to vector<1x128xi32>
    %98 = arith.cmpi slt, %96, %97 : vector<1x128xi32>
    %99 = arith.andi %94, %98 : vector<1x128xi1>
    %c8_i32_34 = arith.constant 8 : i32
    %100 = vector.broadcast %c8_i32_34 : i32 to vector<1x128xi32>
    %101 = arith.addi %2, %100 : vector<1x128xi32>
    %c0_i32_35 = arith.constant 0 : i32
    %102 = vector.broadcast %c0_i32_35 : i32 to vector<1x128xi32>
    %103 = arith.cmpi sge, %101, %102 : vector<1x128xi32>
    %c8_i32_36 = arith.constant 8 : i32
    %104 = vector.broadcast %c8_i32_36 : i32 to vector<1x128xi32>
    %105 = arith.addi %2, %104 : vector<1x128xi32>
    %c64_i32_37 = arith.constant 64 : i32
    %106 = vector.broadcast %c64_i32_37 : i32 to vector<1x128xi32>
    %107 = arith.cmpi slt, %105, %106 : vector<1x128xi32>
    %108 = arith.andi %103, %107 : vector<1x128xi1>
    %c-1_i32_38 = arith.constant -1 : i32
    %109 = vector.broadcast %c-1_i32_38 : i32 to vector<1x128xi32>
    %110 = arith.addi %4, %109 : vector<1x128xi32>
    %c0_i32_39 = arith.constant 0 : i32
    %111 = vector.broadcast %c0_i32_39 : i32 to vector<1x128xi32>
    %112 = arith.cmpi sge, %110, %111 : vector<1x128xi32>
    %113 = arith.andi %108, %112 : vector<1x128xi1>
    %c-1_i32_40 = arith.constant -1 : i32
    %114 = vector.broadcast %c-1_i32_40 : i32 to vector<1x128xi32>
    %115 = arith.addi %4, %114 : vector<1x128xi32>
    %c8_i32_41 = arith.constant 8 : i32
    %116 = vector.broadcast %c8_i32_41 : i32 to vector<1x128xi32>
    %117 = arith.cmpi slt, %115, %116 : vector<1x128xi32>
    %118 = arith.andi %113, %117 : vector<1x128xi1>
    %c8_i32_42 = arith.constant 8 : i32
    %119 = vector.broadcast %c8_i32_42 : i32 to vector<1x128xi32>
    %120 = arith.addi %2, %119 : vector<1x128xi32>
    %c0_i32_43 = arith.constant 0 : i32
    %121 = vector.broadcast %c0_i32_43 : i32 to vector<1x128xi32>
    %122 = arith.cmpi sge, %120, %121 : vector<1x128xi32>
    %c8_i32_44 = arith.constant 8 : i32
    %123 = vector.broadcast %c8_i32_44 : i32 to vector<1x128xi32>
    %124 = arith.addi %2, %123 : vector<1x128xi32>
    %c64_i32_45 = arith.constant 64 : i32
    %125 = vector.broadcast %c64_i32_45 : i32 to vector<1x128xi32>
    %126 = arith.cmpi slt, %124, %125 : vector<1x128xi32>
    %127 = arith.andi %122, %126 : vector<1x128xi1>
    %c0_i32_46 = arith.constant 0 : i32
    %128 = vector.broadcast %c0_i32_46 : i32 to vector<1x128xi32>
    %129 = arith.addi %4, %128 : vector<1x128xi32>
    %c0_i32_47 = arith.constant 0 : i32
    %130 = vector.broadcast %c0_i32_47 : i32 to vector<1x128xi32>
    %131 = arith.cmpi sge, %129, %130 : vector<1x128xi32>
    %132 = arith.andi %127, %131 : vector<1x128xi1>
    %c0_i32_48 = arith.constant 0 : i32
    %133 = vector.broadcast %c0_i32_48 : i32 to vector<1x128xi32>
    %134 = arith.addi %4, %133 : vector<1x128xi32>
    %c8_i32_49 = arith.constant 8 : i32
    %135 = vector.broadcast %c8_i32_49 : i32 to vector<1x128xi32>
    %136 = arith.cmpi slt, %134, %135 : vector<1x128xi32>
    %137 = arith.andi %132, %136 : vector<1x128xi1>
    %c8_i32_50 = arith.constant 8 : i32
    %138 = vector.broadcast %c8_i32_50 : i32 to vector<1x128xi32>
    %139 = arith.addi %2, %138 : vector<1x128xi32>
    %c0_i32_51 = arith.constant 0 : i32
    %140 = vector.broadcast %c0_i32_51 : i32 to vector<1x128xi32>
    %141 = arith.cmpi sge, %139, %140 : vector<1x128xi32>
    %c8_i32_52 = arith.constant 8 : i32
    %142 = vector.broadcast %c8_i32_52 : i32 to vector<1x128xi32>
    %143 = arith.addi %2, %142 : vector<1x128xi32>
    %c64_i32_53 = arith.constant 64 : i32
    %144 = vector.broadcast %c64_i32_53 : i32 to vector<1x128xi32>
    %145 = arith.cmpi slt, %143, %144 : vector<1x128xi32>
    %146 = arith.andi %141, %145 : vector<1x128xi1>
    %c1_i32_54 = arith.constant 1 : i32
    %147 = vector.broadcast %c1_i32_54 : i32 to vector<1x128xi32>
    %148 = arith.addi %4, %147 : vector<1x128xi32>
    %c0_i32_55 = arith.constant 0 : i32
    %149 = vector.broadcast %c0_i32_55 : i32 to vector<1x128xi32>
    %150 = arith.cmpi sge, %148, %149 : vector<1x128xi32>
    %151 = arith.andi %146, %150 : vector<1x128xi1>
    %c1_i32_56 = arith.constant 1 : i32
    %152 = vector.broadcast %c1_i32_56 : i32 to vector<1x128xi32>
    %153 = arith.addi %4, %152 : vector<1x128xi32>
    %c8_i32_57 = arith.constant 8 : i32
    %154 = vector.broadcast %c8_i32_57 : i32 to vector<1x128xi32>
    %155 = arith.cmpi slt, %153, %154 : vector<1x128xi32>
    %156 = arith.andi %151, %155 : vector<1x128xi1>
    %c0 = arith.constant 0 : index
    %c0_58 = arith.constant 0 : index
    %157 = vector.load %arg2[%c0, %c0_58] : memref<18x256xf32, #tpu.memory_space<vmem>>, vector<18x256xf32>
    %c0_59 = arith.constant 0 : index
    %c0_60 = arith.constant 0 : index
    %158 = vector.load %arg3[%c0_59, %c0_60] : memref<1x128xf32, #tpu.memory_space<vmem>>, vector<1x128xf32>
    %c0_61 = arith.constant 0 : index
    %c0_62 = arith.constant 0 : index
    %c0_63 = arith.constant 0 : index
    %159 = vector.load %arg1[%c0_61, %c0_62, %c0_63] : memref<2x256x64xf32, #tpu.memory_space<vmem>>, vector<1x256x64xf32>
    %160 = vector.shape_cast %159 : vector<1x256x64xf32> to vector<256x64xf32>
    %cst = arith.constant dense<0.000000e+00> : vector<18x64xf32>
    %161 = tpu.matmul %157, %160, %cst {dimension_numbers = #tpu.dot_dimension_numbers<[1], [0], [0], [1], [0, 0, 1, 1], [], []>} : vector<18x256xf32>, vector<256x64xf32>, vector<18x64xf32> -> vector<18x64xf32>
    %162 = vector.extract_strided_slice %161 {offsets = [0, 0], sizes = [9, 64], strides = [1, 1]} : vector<18x64xf32> to vector<9x64xf32>
    %163 = vector.extract_strided_slice %161 {offsets = [9, 0], sizes = [9, 64], strides = [1, 1]} : vector<18x64xf32> to vector<9x64xf32>
    %164 = tpu.concatenate %162, %163 in 1 : vector<9x64xf32>, vector<9x64xf32> -> vector<9x128xf32>
    %165 = vector.extract_strided_slice %164 {offsets = [4, 0], sizes = [1, 128], strides = [1, 1]} : vector<9x128xf32> to vector<1x128xf32>
    %166 = vector.extract_strided_slice %164 {offsets = [0, 0], sizes = [1, 128], strides = [1, 1]} : vector<9x128xf32> to vector<1x128xf32>
    %167 = vector.extract_strided_slice %166 {offsets = [0, 119], sizes = [1, 9], strides = [1, 1]} : vector<1x128xf32> to vector<1x9xf32>
    %168 = vector.extract_strided_slice %166 {offsets = [0, 0], sizes = [1, 119], strides = [1, 1]} : vector<1x128xf32> to vector<1x119xf32>
    %169 = tpu.concatenate %167, %168 in 1 : vector<1x9xf32>, vector<1x119xf32> -> vector<1x128xf32>
    %cst_64 = arith.constant 0.000000e+00 : f32
    %170 = vector.broadcast %cst_64 : f32 to vector<1x128xf32>
    %171 = arith.select %23, %169, %170 : vector<1x128xi1>, vector<1x128xf32>
    %172 = arith.addf %165, %171 : vector<1x128xf32>
    %173 = vector.extract_strided_slice %164 {offsets = [1, 0], sizes = [1, 128], strides = [1, 1]} : vector<9x128xf32> to vector<1x128xf32>
    %174 = vector.extract_strided_slice %173 {offsets = [0, 120], sizes = [1, 8], strides = [1, 1]} : vector<1x128xf32> to vector<1x8xf32>
    %175 = vector.extract_strided_slice %173 {offsets = [0, 0], sizes = [1, 120], strides = [1, 1]} : vector<1x128xf32> to vector<1x120xf32>
    %176 = tpu.concatenate %174, %175 in 1 : vector<1x8xf32>, vector<1x120xf32> -> vector<1x128xf32>
    %cst_65 = arith.constant 0.000000e+00 : f32
    %177 = vector.broadcast %cst_65 : f32 to vector<1x128xf32>
    %178 = arith.select %42, %176, %177 : vector<1x128xi1>, vector<1x128xf32>
    %179 = arith.addf %172, %178 : vector<1x128xf32>
    %180 = vector.extract_strided_slice %164 {offsets = [2, 0], sizes = [1, 128], strides = [1, 1]} : vector<9x128xf32> to vector<1x128xf32>
    %181 = vector.extract_strided_slice %180 {offsets = [0, 121], sizes = [1, 7], strides = [1, 1]} : vector<1x128xf32> to vector<1x7xf32>
    %182 = vector.extract_strided_slice %180 {offsets = [0, 0], sizes = [1, 121], strides = [1, 1]} : vector<1x128xf32> to vector<1x121xf32>
    %183 = tpu.concatenate %181, %182 in 1 : vector<1x7xf32>, vector<1x121xf32> -> vector<1x128xf32>
    %cst_66 = arith.constant 0.000000e+00 : f32
    %184 = vector.broadcast %cst_66 : f32 to vector<1x128xf32>
    %185 = arith.select %61, %183, %184 : vector<1x128xi1>, vector<1x128xf32>
    %186 = arith.addf %179, %185 : vector<1x128xf32>
    %187 = vector.extract_strided_slice %164 {offsets = [3, 0], sizes = [1, 128], strides = [1, 1]} : vector<9x128xf32> to vector<1x128xf32>
    %188 = vector.extract_strided_slice %187 {offsets = [0, 127], sizes = [1, 1], strides = [1, 1]} : vector<1x128xf32> to vector<1x1xf32>
    %189 = vector.extract_strided_slice %187 {offsets = [0, 0], sizes = [1, 127], strides = [1, 1]} : vector<1x128xf32> to vector<1x127xf32>
    %190 = tpu.concatenate %188, %189 in 1 : vector<1x1xf32>, vector<1x127xf32> -> vector<1x128xf32>
    %cst_67 = arith.constant 0.000000e+00 : f32
    %191 = vector.broadcast %cst_67 : f32 to vector<1x128xf32>
    %192 = arith.select %80, %190, %191 : vector<1x128xi1>, vector<1x128xf32>
    %193 = arith.addf %186, %192 : vector<1x128xf32>
    %194 = vector.extract_strided_slice %164 {offsets = [5, 0], sizes = [1, 128], strides = [1, 1]} : vector<9x128xf32> to vector<1x128xf32>
    %195 = vector.extract_strided_slice %194 {offsets = [0, 1], sizes = [1, 127], strides = [1, 1]} : vector<1x128xf32> to vector<1x127xf32>
    %196 = vector.extract_strided_slice %194 {offsets = [0, 0], sizes = [1, 1], strides = [1, 1]} : vector<1x128xf32> to vector<1x1xf32>
    %197 = tpu.concatenate %195, %196 in 1 : vector<1x127xf32>, vector<1x1xf32> -> vector<1x128xf32>
    %cst_68 = arith.constant 0.000000e+00 : f32
    %198 = vector.broadcast %cst_68 : f32 to vector<1x128xf32>
    %199 = arith.select %99, %197, %198 : vector<1x128xi1>, vector<1x128xf32>
    %200 = arith.addf %193, %199 : vector<1x128xf32>
    %201 = vector.extract_strided_slice %164 {offsets = [6, 0], sizes = [1, 128], strides = [1, 1]} : vector<9x128xf32> to vector<1x128xf32>
    %202 = vector.extract_strided_slice %201 {offsets = [0, 7], sizes = [1, 121], strides = [1, 1]} : vector<1x128xf32> to vector<1x121xf32>
    %203 = vector.extract_strided_slice %201 {offsets = [0, 0], sizes = [1, 7], strides = [1, 1]} : vector<1x128xf32> to vector<1x7xf32>
    %204 = tpu.concatenate %202, %203 in 1 : vector<1x121xf32>, vector<1x7xf32> -> vector<1x128xf32>
    %cst_69 = arith.constant 0.000000e+00 : f32
    %205 = vector.broadcast %cst_69 : f32 to vector<1x128xf32>
    %206 = arith.select %118, %204, %205 : vector<1x128xi1>, vector<1x128xf32>
    %207 = arith.addf %200, %206 : vector<1x128xf32>
    %208 = vector.extract_strided_slice %164 {offsets = [7, 0], sizes = [1, 128], strides = [1, 1]} : vector<9x128xf32> to vector<1x128xf32>
    %209 = vector.extract_strided_slice %208 {offsets = [0, 8], sizes = [1, 120], strides = [1, 1]} : vector<1x128xf32> to vector<1x120xf32>
    %210 = vector.extract_strided_slice %208 {offsets = [0, 0], sizes = [1, 8], strides = [1, 1]} : vector<1x128xf32> to vector<1x8xf32>
    %211 = tpu.concatenate %209, %210 in 1 : vector<1x120xf32>, vector<1x8xf32> -> vector<1x128xf32>
    %cst_70 = arith.constant 0.000000e+00 : f32
    %212 = vector.broadcast %cst_70 : f32 to vector<1x128xf32>
    %213 = arith.select %137, %211, %212 : vector<1x128xi1>, vector<1x128xf32>
    %214 = arith.addf %207, %213 : vector<1x128xf32>
    %215 = vector.extract_strided_slice %164 {offsets = [8, 0], sizes = [1, 128], strides = [1, 1]} : vector<9x128xf32> to vector<1x128xf32>
    %216 = vector.extract_strided_slice %215 {offsets = [0, 9], sizes = [1, 119], strides = [1, 1]} : vector<1x128xf32> to vector<1x119xf32>
    %217 = vector.extract_strided_slice %215 {offsets = [0, 0], sizes = [1, 9], strides = [1, 1]} : vector<1x128xf32> to vector<1x9xf32>
    %218 = tpu.concatenate %216, %217 in 1 : vector<1x119xf32>, vector<1x9xf32> -> vector<1x128xf32>
    %cst_71 = arith.constant 0.000000e+00 : f32
    %219 = vector.broadcast %cst_71 : f32 to vector<1x128xf32>
    %220 = arith.select %156, %218, %219 : vector<1x128xi1>, vector<1x128xf32>
    %221 = arith.addf %214, %220 : vector<1x128xf32>
    %222 = arith.addf %221, %158 : vector<1x128xf32>
    %223 = arith.negf %222 : vector<1x128xf32>
    %224 = math.exp %223 : vector<1x128xf32>
    %cst_72 = arith.constant 1.000000e+00 : f32
    %225 = vector.broadcast %cst_72 : f32 to vector<1x128xf32>
    %226 = arith.addf %225, %224 : vector<1x128xf32>
    %227 = arith.divf %225, %226 : vector<1x128xf32>
    %c0_73 = arith.constant 0 : index
    %c0_74 = arith.constant 0 : index
    %c0_75 = arith.constant 0 : index
    %228 = vector.load %arg4[%c0_73, %c0_74, %c0_75] : memref<1x2x128xf32, #tpu.memory_space<vmem>>, vector<1x1x128xf32>
    %229 = vector.shape_cast %228 : vector<1x1x128xf32> to vector<1x128xf32>
    %230 = vector.shape_cast %227 : vector<1x128xf32> to vector<1x1x128xf32>
    tpu.vector_store %arg4[%c0_73, %c0_74, %c0_75], %230 {strides = array<i32>} : memref<1x2x128xf32, #tpu.memory_space<vmem>>, vector<1x1x128xf32>,
    %c1 = arith.constant 1 : index
    %c0_76 = arith.constant 0 : index
    %c0_77 = arith.constant 0 : index
    %231 = vector.load %arg1[%c1, %c0_76, %c0_77] : memref<2x256x64xf32, #tpu.memory_space<vmem>>, vector<1x256x64xf32>
    %232 = vector.shape_cast %231 : vector<1x256x64xf32> to vector<256x64xf32>
    %cst_78 = arith.constant dense<0.000000e+00> : vector<18x64xf32>
    %233 = tpu.matmul %157, %232, %cst_78 {dimension_numbers = #tpu.dot_dimension_numbers<[1], [0], [0], [1], [0, 0, 1, 1], [], []>} : vector<18x256xf32>, vector<256x64xf32>, vector<18x64xf32> -> vector<18x64xf32>
    %234 = vector.extract_strided_slice %233 {offsets = [0, 0], sizes = [9, 64], strides = [1, 1]} : vector<18x64xf32> to vector<9x64xf32>
    %235 = vector.extract_strided_slice %233 {offsets = [9, 0], sizes = [9, 64], strides = [1, 1]} : vector<18x64xf32> to vector<9x64xf32>
    %236 = tpu.concatenate %234, %235 in 1 : vector<9x64xf32>, vector<9x64xf32> -> vector<9x128xf32>
    %237 = vector.extract_strided_slice %236 {offsets = [4, 0], sizes = [1, 128], strides = [1, 1]} : vector<9x128xf32> to vector<1x128xf32>
    %238 = vector.extract_strided_slice %236 {offsets = [0, 0], sizes = [1, 128], strides = [1, 1]} : vector<9x128xf32> to vector<1x128xf32>
    %239 = vector.extract_strided_slice %238 {offsets = [0, 119], sizes = [1, 9], strides = [1, 1]} : vector<1x128xf32> to vector<1x9xf32>
    %240 = vector.extract_strided_slice %238 {offsets = [0, 0], sizes = [1, 119], strides = [1, 1]} : vector<1x128xf32> to vector<1x119xf32>
    %241 = tpu.concatenate %239, %240 in 1 : vector<1x9xf32>, vector<1x119xf32> -> vector<1x128xf32>
    %cst_79 = arith.constant 0.000000e+00 : f32
    %242 = vector.broadcast %cst_79 : f32 to vector<1x128xf32>
    %243 = arith.select %23, %241, %242 : vector<1x128xi1>, vector<1x128xf32>
    %244 = arith.addf %237, %243 : vector<1x128xf32>
    %245 = vector.extract_strided_slice %236 {offsets = [1, 0], sizes = [1, 128], strides = [1, 1]} : vector<9x128xf32> to vector<1x128xf32>
    %246 = vector.extract_strided_slice %245 {offsets = [0, 120], sizes = [1, 8], strides = [1, 1]} : vector<1x128xf32> to vector<1x8xf32>
    %247 = vector.extract_strided_slice %245 {offsets = [0, 0], sizes = [1, 120], strides = [1, 1]} : vector<1x128xf32> to vector<1x120xf32>
    %248 = tpu.concatenate %246, %247 in 1 : vector<1x8xf32>, vector<1x120xf32> -> vector<1x128xf32>
    %cst_80 = arith.constant 0.000000e+00 : f32
    %249 = vector.broadcast %cst_80 : f32 to vector<1x128xf32>
    %250 = arith.select %42, %248, %249 : vector<1x128xi1>, vector<1x128xf32>
    %251 = arith.addf %244, %250 : vector<1x128xf32>
    %252 = vector.extract_strided_slice %236 {offsets = [2, 0], sizes = [1, 128], strides = [1, 1]} : vector<9x128xf32> to vector<1x128xf32>
    %253 = vector.extract_strided_slice %252 {offsets = [0, 121], sizes = [1, 7], strides = [1, 1]} : vector<1x128xf32> to vector<1x7xf32>
    %254 = vector.extract_strided_slice %252 {offsets = [0, 0], sizes = [1, 121], strides = [1, 1]} : vector<1x128xf32> to vector<1x121xf32>
    %255 = tpu.concatenate %253, %254 in 1 : vector<1x7xf32>, vector<1x121xf32> -> vector<1x128xf32>
    %cst_81 = arith.constant 0.000000e+00 : f32
    %256 = vector.broadcast %cst_81 : f32 to vector<1x128xf32>
    %257 = arith.select %61, %255, %256 : vector<1x128xi1>, vector<1x128xf32>
    %258 = arith.addf %251, %257 : vector<1x128xf32>
    %259 = vector.extract_strided_slice %236 {offsets = [3, 0], sizes = [1, 128], strides = [1, 1]} : vector<9x128xf32> to vector<1x128xf32>
    %260 = vector.extract_strided_slice %259 {offsets = [0, 127], sizes = [1, 1], strides = [1, 1]} : vector<1x128xf32> to vector<1x1xf32>
    %261 = vector.extract_strided_slice %259 {offsets = [0, 0], sizes = [1, 127], strides = [1, 1]} : vector<1x128xf32> to vector<1x127xf32>
    %262 = tpu.concatenate %260, %261 in 1 : vector<1x1xf32>, vector<1x127xf32> -> vector<1x128xf32>
    %cst_82 = arith.constant 0.000000e+00 : f32
    %263 = vector.broadcast %cst_82 : f32 to vector<1x128xf32>
    %264 = arith.select %80, %262, %263 : vector<1x128xi1>, vector<1x128xf32>
    %265 = arith.addf %258, %264 : vector<1x128xf32>
    %266 = vector.extract_strided_slice %236 {offsets = [5, 0], sizes = [1, 128], strides = [1, 1]} : vector<9x128xf32> to vector<1x128xf32>
    %267 = vector.extract_strided_slice %266 {offsets = [0, 1], sizes = [1, 127], strides = [1, 1]} : vector<1x128xf32> to vector<1x127xf32>
    %268 = vector.extract_strided_slice %266 {offsets = [0, 0], sizes = [1, 1], strides = [1, 1]} : vector<1x128xf32> to vector<1x1xf32>
    %269 = tpu.concatenate %267, %268 in 1 : vector<1x127xf32>, vector<1x1xf32> -> vector<1x128xf32>
    %cst_83 = arith.constant 0.000000e+00 : f32
    %270 = vector.broadcast %cst_83 : f32 to vector<1x128xf32>
    %271 = arith.select %99, %269, %270 : vector<1x128xi1>, vector<1x128xf32>
    %272 = arith.addf %265, %271 : vector<1x128xf32>
    %273 = vector.extract_strided_slice %236 {offsets = [6, 0], sizes = [1, 128], strides = [1, 1]} : vector<9x128xf32> to vector<1x128xf32>
    %274 = vector.extract_strided_slice %273 {offsets = [0, 7], sizes = [1, 121], strides = [1, 1]} : vector<1x128xf32> to vector<1x121xf32>
    %275 = vector.extract_strided_slice %273 {offsets = [0, 0], sizes = [1, 7], strides = [1, 1]} : vector<1x128xf32> to vector<1x7xf32>
    %276 = tpu.concatenate %274, %275 in 1 : vector<1x121xf32>, vector<1x7xf32> -> vector<1x128xf32>
    %cst_84 = arith.constant 0.000000e+00 : f32
    %277 = vector.broadcast %cst_84 : f32 to vector<1x128xf32>
    %278 = arith.select %118, %276, %277 : vector<1x128xi1>, vector<1x128xf32>
    %279 = arith.addf %272, %278 : vector<1x128xf32>
    %280 = vector.extract_strided_slice %236 {offsets = [7, 0], sizes = [1, 128], strides = [1, 1]} : vector<9x128xf32> to vector<1x128xf32>
    %281 = vector.extract_strided_slice %280 {offsets = [0, 8], sizes = [1, 120], strides = [1, 1]} : vector<1x128xf32> to vector<1x120xf32>
    %282 = vector.extract_strided_slice %280 {offsets = [0, 0], sizes = [1, 8], strides = [1, 1]} : vector<1x128xf32> to vector<1x8xf32>
    %283 = tpu.concatenate %281, %282 in 1 : vector<1x120xf32>, vector<1x8xf32> -> vector<1x128xf32>
    %cst_85 = arith.constant 0.000000e+00 : f32
    %284 = vector.broadcast %cst_85 : f32 to vector<1x128xf32>
    %285 = arith.select %137, %283, %284 : vector<1x128xi1>, vector<1x128xf32>
    %286 = arith.addf %279, %285 : vector<1x128xf32>
    %287 = vector.extract_strided_slice %236 {offsets = [8, 0], sizes = [1, 128], strides = [1, 1]} : vector<9x128xf32> to vector<1x128xf32>
    %288 = vector.extract_strided_slice %287 {offsets = [0, 9], sizes = [1, 119], strides = [1, 1]} : vector<1x128xf32> to vector<1x119xf32>
    %289 = vector.extract_strided_slice %287 {offsets = [0, 0], sizes = [1, 9], strides = [1, 1]} : vector<1x128xf32> to vector<1x9xf32>
    %290 = tpu.concatenate %288, %289 in 1 : vector<1x119xf32>, vector<1x9xf32> -> vector<1x128xf32>
    %cst_86 = arith.constant 0.000000e+00 : f32
    %291 = vector.broadcast %cst_86 : f32 to vector<1x128xf32>
    %292 = arith.select %156, %290, %291 : vector<1x128xi1>, vector<1x128xf32>
    %293 = arith.addf %286, %292 : vector<1x128xf32>
    %294 = arith.addf %293, %158 : vector<1x128xf32>
    %295 = arith.negf %294 : vector<1x128xf32>
    %296 = math.exp %295 : vector<1x128xf32>
    %cst_87 = arith.constant 1.000000e+00 : f32
    %297 = vector.broadcast %cst_87 : f32 to vector<1x128xf32>
    %298 = arith.addf %297, %296 : vector<1x128xf32>
    %299 = arith.divf %297, %298 : vector<1x128xf32>
    %c0_88 = arith.constant 0 : index
    %c1_89 = arith.constant 1 : index
    %c0_90 = arith.constant 0 : index
    %300 = vector.load %arg4[%c0_88, %c1_89, %c0_90] : memref<1x2x128xf32, #tpu.memory_space<vmem>>, vector<1x1x128xf32>
    %301 = vector.shape_cast %300 : vector<1x1x128xf32> to vector<1x128xf32>
    %302 = vector.shape_cast %299 : vector<1x128xf32> to vector<1x1x128xf32>
    tpu.vector_store %arg4[%c0_88, %c1_89, %c0_90], %302 {strides = array<i32>} : memref<1x2x128xf32, #tpu.memory_space<vmem>>, vector<1x1x128xf32>,
    return
  }
  func.func @transform_0(%arg0: i32) -> (i32, i32, i32) {
    %c0_i32 = arith.constant 0 : i32
    %c0_i32_0 = arith.constant 0 : i32
    %c0_i32_1 = arith.constant 0 : i32
    return %arg0, %c0_i32, %c0_i32_0 : i32, i32, i32
  }
  func.func @transform_1(%arg0: i32) -> (i32, i32) {
    %c0_i32 = arith.constant 0 : i32
    %c0_i32_0 = arith.constant 0 : i32
    %c0_i32_1 = arith.constant 0 : i32
    return %c0_i32, %c0_i32_0 : i32, i32
  }
  func.func @transform_2(%arg0: i32) -> (i32, i32) {
    %c0_i32 = arith.constant 0 : i32
    %c0_i32_0 = arith.constant 0 : i32
    %c0_i32_1 = arith.constant 0 : i32
    return %c0_i32, %c0_i32_0 : i32, i32
  }
  func.func @transform_3(%arg0: i32) -> (i32, i32, i32) {
    %c0_i32 = arith.constant 0 : i32
    %c0_i32_0 = arith.constant 0 : i32
    %c0_i32_1 = arith.constant 0 : i32
    return %arg0, %c0_i32, %c0_i32_0 : i32, i32, i32
  }
}

</mosaic_0001>

<llo_original>
// kernel: color_head_forward.1
$region0: #{color_head_forward.1}
  #allocation0 [shape = 'u32[]', space=smem, size = 0x4, offset = 0x4, fixed_abs, tag = 'smem constant byte address 0x4 - core index']
  #allocation1 [shape = 'u32[144,128]{1,0:T(1,128)}', space=vmem, size = 0x12000, scoped, tag = 'internal scratch']
  %s0 = inlined_call_operand.vmem [shape: f32[2,256,64], index: 0, kind: input, shape index: {}]
  %s1 = inlined_call_operand.vmem [shape: f32[18,256], index: 1, kind: input, shape index: {}]
  %s2 = inlined_call_operand.vmem [shape: f32[1,128], index: 2, kind: input, shape index: {}]
  %s3 = inlined_call_operand.vmem [shape: f32[1,2,128], index: 3, kind: output, shape index: {}]
  %s4 = sld [smem:[#allocation0]]
  $region22: #{color_head_forward.1} parent=0
    _
  %s6 = ssub.s32 1, %s4
  %s7 = scalar_select 0, %s6, %s4
  // Predicated region
  $region2: #{color_head_forward.1} parent=0 // pred_check
    _
  $region3: #{color_head_forward.1} parent=0 // pred_check_branch
    %9 = sbr.rel (0) target = $region5
  $region4: #{color_head_forward.1} parent=0 // pred_region
    _
  $region5: #{color_head_forward.1} parent=0 // pred_fallthru
    _
  // Predicated region
  $region6: #{color_head_forward.1} parent=0 // pred_check
    _
  $region7: #{color_head_forward.1} parent=0 // pred_check_branch
    %11 = sbr.rel (0) target = $region9
  $region8: #{color_head_forward.1} parent=0 // pred_region
    _
  $region9: #{color_head_forward.1} parent=0 // pred_fallthru
    _
  // Predicated region
  $region10: #{color_head_forward.1} parent=0 // pred_check
    _
  $region11: #{color_head_forward.1} parent=0 // pred_check_branch
    %13 = sbr.rel (0) target = $region13
  $region12: #{color_head_forward.1} parent=0 // pred_region
    _
  $region13: #{color_head_forward.1} parent=0 // pred_fallthru
    _
  %v14 = vlaneseq
  %v15 = vand.u32 %v14, 127
  %v16 = vand.u32 %v15, 63
  %v17 = vand.u32 %v15, 7
  %v18 = vadd.s32 %v16, 4294967288
  %vm19 = vcmp.ge.s32.totalorder %v18, 0
  %vm20 = vcmp.lt.s32.totalorder %v18, 64
  %vm21 = vmand %vm19, %vm20
  %v22 = vadd.s32 %v17, 4294967295
  %vm23 = vcmp.ge.s32.totalorder %v22, 0
  %vm24 = vmand %vm21, %vm23
  %vm25 = vcmp.lt.s32.totalorder %v22, 8
  %vm26 = vmand %vm24, %vm25
  %vm27 = vcmp.ge.s32.totalorder %v17, 0
  %vm28 = vmand %vm21, %vm27
  %vm29 = vcmp.lt.s32.totalorder %v17, 8
  %vm30 = vmand %vm28, %vm29
  %v31 = vadd.s32 %v17, 1
  %vm32 = vcmp.ge.s32.totalorder %v31, 0
  %vm33 = vmand %vm21, %vm32
  %vm34 = vcmp.lt.s32.totalorder %v31, 8
  %vm35 = vmand %vm33, %vm34
  %vm36 = vcmp.ge.s32.totalorder %v16, 0
  %vm37 = vcmp.lt.s32.totalorder %v16, 64
  %vm38 = vmand %vm36, %vm37
  %vm39 = vmand %vm38, %vm23
  %vm40 = vmand %vm39, %vm25
  %vm41 = vmand %vm38, %vm32
  %vm42 = vmand %vm41, %vm34
  %v43 = vadd.s32 %v16, 8
  %vm44 = vcmp.ge.s32.totalorder %v43, 0
  %vm45 = vcmp.lt.s32.totalorder %v43, 64
  %vm46 = vmand %vm44, %vm45
  %vm47 = vmand %vm46, %vm23
  %vm48 = vmand %vm47, %vm25
  %vm49 = vmand %vm46, %vm27
  %vm50 = vmand %vm49, %vm29
  %vm51 = vmand %vm46, %vm32
  %vm52 = vmand %vm51, %vm34
  %v53 = vld [vmem:[%s1] sm:$0xff]
  %v54 = vld [vmem:[%s1 + $0x8] sm:$0xff]
  %v55 = vld [vmem:[%s1 + $0x10] sm:$0xff]
  %v56 = vld [vmem:[%s1 + $0x18] sm:$0xff]
  %v57 = vld [vmem:[%s1 + $0x20] sm:$0x3]
  %v58 = vld [vmem:[%s1 + $0x28] sm:$0x3]
  %v59 = vld [vmem:[%s2] sm:$0x1]
  %v60 = vld [vmem:[%s0] sm:$0xff]
  %v61 = vld [vmem:[%s0 + $0x8] sm:$0xff]
  %v62 = vld [vmem:[%s0 + $0x10] sm:$0xff]
  %v63 = vld [vmem:[%s0 + $0x18] sm:$0xff]
  %v64 = vld [vmem:[%s0 + $0x20] sm:$0xff]
  %v65 = vld [vmem:[%s0 + $0x28] sm:$0xff]
  %v66 = vld [vmem:[%s0 + $0x30] sm:$0xff]
  %v67 = vld [vmem:[%s0 + $0x38] sm:$0xff]
  %v68 = vld [vmem:[%s0 + $0x40] sm:$0xff]
  %v69 = vld [vmem:[%s0 + $0x48] sm:$0xff]
  %v70 = vld [vmem:[%s0 + $0x50] sm:$0xff]
  %v71 = vld [vmem:[%s0 + $0x58] sm:$0xff]
  %v72 = vld [vmem:[%s0 + $0x60] sm:$0xff]
  %v73 = vld [vmem:[%s0 + $0x68] sm:$0xff]
  %v74 = vld [vmem:[%s0 + $0x70] sm:$0xff]
  %v75 = vld [vmem:[%s0 + $0x78] sm:$0xff]
  %v76 = vld [vmem:[%s0 + $0x80] sm:$0xff]
  %v77 = vld [vmem:[%s0 + $0x88] sm:$0xff]
  %v78 = vld [vmem:[%s0 + $0x90] sm:$0xff]
  %v79 = vld [vmem:[%s0 + $0x98] sm:$0xff]
  %v80 = vld [vmem:[%s0 + $0xa0] sm:$0xff]
  %v81 = vld [vmem:[%s0 + $0xa8] sm:$0xff]
  %v82 = vld [vmem:[%s0 + $0xb0] sm:$0xff]
  %v83 = vld [vmem:[%s0 + $0xb8] sm:$0xff]
  %v84 = vld [vmem:[%s0 + $0xc0] sm:$0xff]
  %v85 = vld [vmem:[%s0 + $0xc8] sm:$0xff]
  %v86 = vld [vmem:[%s0 + $0xd0] sm:$0xff]
  %v87 = vld [vmem:[%s0 + $0xd8] sm:$0xff]
  %v88 = vld [vmem:[%s0 + $0xe0] sm:$0xff]
  %v89 = vld [vmem:[%s0 + $0xe8] sm:$0xff]
  %v90 = vld [vmem:[%s0 + $0xf0] sm:$0xff]
  %v91 = vld [vmem:[%s0 + $0xf8] sm:$0xff]
  %92 = vmatprep.subr.mxu0 0.0
  %93 = vmatpush1.msra.mxu0 %v60
  %94 = vmatprep.subr.mxu0 0.0
  %95 = vmatpush1.msra.mxu0 %v61
  %96 = vmatprep.subr.mxu0 0.0
  %97 = vmatpush1.msra.mxu0 %v62
  %98 = vmatprep.subr.mxu0 0.0
  %99 = vmatpush1.msra.mxu0 %v63
  %100 = vmatprep.subr.mxu0 0.0
  %101 = vmatpush1.msra.mxu0 %v64
  %102 = vmatprep.subr.mxu0 0.0
  %103 = vmatpush1.msra.mxu0 %v65
  %104 = vmatprep.subr.mxu0 0.0
  %105 = vmatpush1.msra.mxu0 %v66
  %106 = vmatprep.subr.mxu0 0.0
  %107 = vmatpush1.msra.mxu0 %v67
  %108 = vmatprep.subr.mxu0 0.0
  %109 = vmatpush1.msra.mxu0 %v68
  %110 = vmatprep.subr.mxu0 0.0
  %111 = vmatpush1.msra.mxu0 %v69
  %112 = vmatprep.subr.mxu0 0.0
  %113 = vmatpush1.msra.mxu0 %v70
  %114 = vmatprep.subr.mxu0 0.0
  %115 = vmatpush1.msra.mxu0 %v71
  %116 = vmatprep.subr.mxu0 0.0
  %117 = vmatpush1.msra.mxu0 %v72
  %118 = vmatprep.subr.mxu0 0.0
  %119 = vmatpush1.msra.mxu0 %v73
  %120 = vmatprep.subr.mxu0 0.0
  %121 = vmatpush1.msra.mxu0 %v74
  %122 = vmatprep.subr.mxu0 0.0
  %123 = vmatpush1.msra.mxu0 %v75
  %124 = vmatprep.subr.mxu0 0.0
  %125 = vmatpush1.msra.mxu0 %v76
  %126 = vmatprep.subr.mxu0 0.0
  %127 = vmatpush1.msra.mxu0 %v77
  %128 = vmatprep.subr.mxu0 0.0
  %129 = vmatpush1.msra.mxu0 %v78
  %130 = vmatprep.subr.mxu0 0.0
  %131 = vmatpush1.msra.mxu0 %v79
  %132 = vmatprep.subr.mxu0 0.0
  %133 = vmatpush1.msra.mxu0 %v80
  %134 = vmatprep.subr.mxu0 0.0
  %135 = vmatpush1.msra.mxu0 %v81
  %136 = vmatprep.subr.mxu0 0.0
  %137 = vmatpush1.msra.mxu0 %v82
  %138 = vmatprep.subr.mxu0 0.0
  %139 = vmatpush1.msra.mxu0 %v83
  %140 = vmatprep.subr.mxu0 0.0
  %141 = vmatpush1.msra.mxu0 %v84
  %142 = vmatprep.subr.mxu0 0.0
  %143 = vmatpush1.msra.mxu0 %v85
  %144 = vmatprep.subr.mxu0 0.0
  %145 = vmatpush1.msra.mxu0 %v86
  %146 = vmatprep.subr.mxu0 0.0
  %147 = vmatpush1.msra.mxu0 %v87
  %148 = vmatprep.subr.mxu0 0.0
  %149 = vmatpush1.msra.mxu0 %v88
  %150 = vmatprep.subr.mxu0 0.0
  %151 = vmatpush1.msra.mxu0 %v89
  %152 = vmatprep.subr.mxu0 0.0
  %153 = vmatpush1.msra.mxu0 %v90
  %154 = vmatprep.subr.mxu0 0.0
  %155 = vmatpush1.msra.mxu0 %v91
  %156 = vmatprep.mubr.f32.mxu0 %v54
  %157 = vmatmul.mubr.f32.gmra.mrb[0].mxu0 %v53
  %v158 = vpop.f32.mrb[0].mxu0
  %v159 = vadd.f32 0.0, %v158
  %v160 = vpop.f32.mrb[0].mxu0
  %161 = vmatprep.mubr.f32.mxu0 %v56
  %162 = vmatmul.mubr.f32.gmra.mrb[0].mxu0 %v55
  %v163 = vpop.f32.mrb[0].mxu0
  %v164 = vadd.f32 0.0, %v163
  %v165 = vpop.f32.mrb[0].mxu0
  %166 = vmatprep.mubr.f32.mxu0 %v58
  %167 = vmatmul.mubr.f32.gmra.mrb[0].mxu0 %v57
  %v168 = vpop.f32.mrb[0].mxu0
  %v169 = vadd.f32 0.0, %v168
  %v170 = vpop.f32.mrb[0].mxu0
  %171 = vdwg.mxu0
  %vm174 = vcmask 1046528
  %v175 = vrot.slane %v164, 1
  %v176 = vrot.slane %v169, 1
  %v177 = vsel %vm174, %v175, %v176
  %178 = vrot.lane.b32.xlu0 %v177, 64
  %v179 = vpop.permute.xlu0 %178
  %180 = vrot.lane.b32.xlu0 %v176, 64
  %v181 = vpop.permute.xlu0 %180
  %vm184 = vcmask 523264
  %v185 = vsel %vm184, %v159, %v179
  %v186 = vsel %vm184, %v164, %v181
  %188 = vrot.lane.b32.xlu0 %v185, 9
  %v189 = vpop.permute.xlu0 %188
  %v191 = vsel %vm26, %v189, 0.0
  %v193 = vrot.slane %v191, 4
  %v195 = vadd.f32 %v185, %v193
  %196 = vrot.lane.b32.xlu0 %v185, 8
  %v197 = vpop.permute.xlu0 %196
  %v199 = vsel %vm30, %v197, 0.0
  %v201 = vrot.slane %v199, 5
  %v203 = vadd.f32 %v195, %v201
  %204 = vrot.lane.b32.xlu0 %v185, 7
  %v205 = vpop.permute.xlu0 %204
  %v207 = vsel %vm35, %v205, 0.0
  %v209 = vrot.slane %v207, 6
  %v211 = vadd.f32 %v203, %v209
  %212 = vrot.lane.b32.xlu0 %v185, 1
  %v213 = vpop.permute.xlu0 %212
  %v215 = vsel %vm40, %v213, 0.0
  %v217 = vrot.slane %v215, 7
  %v219 = vadd.f32 %v211, %v217
  %220 = vrot.lane.b32.xlu0 %v185, 127
  %v221 = vpop.permute.xlu0 %220
  %v223 = vsel %vm42, %v221, 0.0
  %v225 = vrot.slane %v223, 1
  %v227 = vadd.f32 %v219, %v225
  %228 = vrot.lane.b32.xlu0 %v185, 121
  %v229 = vpop.permute.xlu0 %228
  %v231 = vsel %vm48, %v229, 0.0
  %v233 = vrot.slane %v231, 2
  %v235 = vadd.f32 %v227, %v233
  %236 = vrot.lane.b32.xlu0 %v185, 120
  %v237 = vpop.permute.xlu0 %236
  %v239 = vsel %vm50, %v237, 0.0
  %v241 = vrot.slane %v239, 3
  %v243 = vadd.f32 %v235, %v241
  %245 = vrot.lane.b32.xlu0 %v186, 119
  %v246 = vpop.permute.xlu0 %245
  %v248 = vsel %vm52, %v246, 0.0
  %v250 = vrot.slane %v248, 4
  %v252 = vadd.f32 %v243, %v250
  %v254 = vlaneseq
  %v255 = vshrl.u32 %v254, 7
  %v256 = vsub.s32 0, %v255
  %v257 = vrot.slane %v59, %v256
  %v259 = vadd.f32 %v252, %v257
  %v260 = vxor.u32 %v259, 2147483648
  %v261 = vmul.f32 %v260, 1.442695
  %v262 = vpow.pop %v261
  %v263 = vadd.f32 %v262, 1.0
  %v264 = vrcp.pop %v263
  %v265 = vmul.f32 1.0, %v264
  %266 = vst [vmem:[%s3 - $0x4] sm:$0x10] %v265
  %s267 = scalar_lea.vmem %s0, 256
  %v268 = vld [vmem:[%s267] sm:$0xff]
  %v269 = vld [vmem:[%s267 + $0x8] sm:$0xff]
  %v270 = vld [vmem:[%s267 + $0x10] sm:$0xff]
  %v271 = vld [vmem:[%s267 + $0x18] sm:$0xff]
  %v272 = vld [vmem:[%s267 + $0x20] sm:$0xff]
  %v273 = vld [vmem:[%s267 + $0x28] sm:$0xff]
  %v274 = vld [vmem:[%s267 + $0x30] sm:$0xff]
  %v275 = vld [vmem:[%s267 + $0x38] sm:$0xff]
  %v276 = vld [vmem:[%s267 + $0x40] sm:$0xff]
  %v277 = vld [vmem:[%s267 + $0x48] sm:$0xff]
  %v278 = vld [vmem:[%s267 + $0x50] sm:$0xff]
  %v279 = vld [vmem:[%s267 + $0x58] sm:$0xff]
  %v280 = vld [vmem:[%s267 + $0x60] sm:$0xff]
  %v281 = vld [vmem:[%s267 + $0x68] sm:$0xff]
  %v282 = vld [vmem:[%s267 + $0x70] sm:$0xff]
  %v283 = vld [vmem:[%s267 + $0x78] sm:$0xff]
  %v284 = vld [vmem:[%s267 + $0x80] sm:$0xff]
  %v285 = vld [vmem:[%s267 + $0x88] sm:$0xff]
  %v286 = vld [vmem:[%s267 + $0x90] sm:$0xff]
  %v287 = vld [vmem:[%s267 + $0x98] sm:$0xff]
  %v288 = vld [vmem:[%s267 + $0xa0] sm:$0xff]
  %v289 = vld [vmem:[%s267 + $0xa8] sm:$0xff]
  %v290 = vld [vmem:[%s267 + $0xb0] sm:$0xff]
  %v291 = vld [vmem:[%s267 + $0xb8] sm:$0xff]
  %v292 = vld [vmem:[%s267 + $0xc0] sm:$0xff]
  %v293 = vld [vmem:[%s267 + $0xc8] sm:$0xff]
  %v294 = vld [vmem:[%s267 + $0xd0] sm:$0xff]
  %v295 = vld [vmem:[%s267 + $0xd8] sm:$0xff]
  %v296 = vld [vmem:[%s267 + $0xe0] sm:$0xff]
  %v297 = vld [vmem:[%s267 + $0xe8] sm:$0xff]
  %v298 = vld [vmem:[%s267 + $0xf0] sm:$0xff]
  %v299 = vld [vmem:[%s267 + $0xf8] sm:$0xff]
  %300 = vmatprep.subr.mxu0 0.0
  %301 = vmatpush1.msra.mxu0 %v268
  %302 = vmatprep.subr.mxu0 0.0
  %303 = vmatpush1.msra.mxu0 %v269
  %304 = vmatprep.subr.mxu0 0.0
  %305 = vmatpush1.msra.mxu0 %v270
  %306 = vmatprep.subr.mxu0 0.0
  %307 = vmatpush1.msra.mxu0 %v271
  %308 = vmatprep.subr.mxu0 0.0
  %309 = vmatpush1.msra.mxu0 %v272
  %310 = vmatprep.subr.mxu0 0.0
  %311 = vmatpush1.msra.mxu0 %v273
  %312 = vmatprep.subr.mxu0 0.0
  %313 = vmatpush1.msra.mxu0 %v274
  %314 = vmatprep.subr.mxu0 0.0
  %315 = vmatpush1.msra.mxu0 %v275
  %316 = vmatprep.subr.mxu0 0.0
  %317 = vmatpush1.msra.mxu0 %v276
  %318 = vmatprep.subr.mxu0 0.0
  %319 = vmatpush1.msra.mxu0 %v277
  %320 = vmatprep.subr.mxu0 0.0
  %321 = vmatpush1.msra.mxu0 %v278
  %322 = vmatprep.subr.mxu0 0.0
  %323 = vmatpush1.msra.mxu0 %v279
  %324 = vmatprep.subr.mxu0 0.0
  %325 = vmatpush1.msra.mxu0 %v280
  %326 = vmatprep.subr.mxu0 0.0
  %327 = vmatpush1.msra.mxu0 %v281
  %328 = vmatprep.subr.mxu0 0.0
  %329 = vmatpush1.msra.mxu0 %v282
  %330 = vmatprep.subr.mxu0 0.0
  %331 = vmatpush1.msra.mxu0 %v283
  %332 = vmatprep.subr.mxu0 0.0
  %333 = vmatpush1.msra.mxu0 %v284
  %334 = vmatprep.subr.mxu0 0.0
  %335 = vmatpush1.msra.mxu0 %v285
  %336 = vmatprep.subr.mxu0 0.0
  %337 = vmatpush1.msra.mxu0 %v286
  %338 = vmatprep.subr.mxu0 0.0
  %339 = vmatpush1.msra.mxu0 %v287
  %340 = vmatprep.subr.mxu0 0.0
  %341 = vmatpush1.msra.mxu0 %v288
  %342 = vmatprep.subr.mxu0 0.0
  %343 = vmatpush1.msra.mxu0 %v289
  %344 = vmatprep.subr.mxu0 0.0
  %345 = vmatpush1.msra.mxu0 %v290
  %346 = vmatprep.subr.mxu0 0.0
  %347 = vmatpush1.msra.mxu0 %v291
  %348 = vmatprep.subr.mxu0 0.0
  %349 = vmatpush1.msra.mxu0 %v292
  %350 = vmatprep.subr.mxu0 0.0
  %351 = vmatpush1.msra.mxu0 %v293
  %352 = vmatprep.subr.mxu0 0.0
  %353 = vmatpush1.msra.mxu0 %v294
  %354 = vmatprep.subr.mxu0 0.0
  %355 = vmatpush1.msra.mxu0 %v295
  %356 = vmatprep.subr.mxu0 0.0
  %357 = vmatpush1.msra.mxu0 %v296
  %358 = vmatprep.subr.mxu0 0.0
  %359 = vmatpush1.msra.mxu0 %v297
  %360 = vmatprep.subr.mxu0 0.0
  %361 = vmatpush1.msra.mxu0 %v298
  %362 = vmatprep.subr.mxu0 0.0
  %363 = vmatpush1.msra.mxu0 %v299
  %364 = vmatprep.mubr.f32.mxu0 %v54
  %365 = vmatmul.mubr.f32.gmra.mrb[0].mxu0 %v53
  %v366 = vpop.f32.mrb[0].mxu0
  %v367 = vadd.f32 0.0, %v366
  %v368 = vpop.f32.mrb[0].mxu0
  %369 = vmatprep.mubr.f32.mxu0 %v56
  %370 = vmatmul.mubr.f32.gmra.mrb[0].mxu0 %v55
  %v371 = vpop.f32.mrb[0].mxu0
  %v372 = vadd.f32 0.0, %v371
  %v373 = vpop.f32.mrb[0].mxu0
  %374 = vmatprep.mubr.f32.mxu0 %v58
  %375 = vmatmul.mubr.f32.gmra.mrb[0].mxu0 %v57
  %v376 = vpop.f32.mrb[0].mxu0
  %v377 = vadd.f32 0.0, %v376
  %v378 = vpop.f32.mrb[0].mxu0
  %379 = vdwg.mxu0
  %v382 = vrot.slane %v372, 1
  %v383 = vrot.slane %v377, 1
  %v384 = vsel %vm174, %v382, %v383
  %385 = vrot.lane.b32.xlu0 %v384, 64
  %v386 = vpop.permute.xlu0 %385
  %387 = vrot.lane.b32.xlu0 %v383, 64
  %v388 = vpop.permute.xlu0 %387
  %v391 = vsel %vm184, %v367, %v386
  %v392 = vsel %vm184, %v372, %v388
  %394 = vrot.lane.b32.xlu0 %v391, 9
  %v395 = vpop.permute.xlu0 %394
  %v397 = vsel %vm26, %v395, 0.0
  %v399 = vrot.slane %v397, 4
  %v401 = vadd.f32 %v391, %v399
  %402 = vrot.lane.b32.xlu0 %v391, 8
  %v403 = vpop.permute.xlu0 %402
  %v405 = vsel %vm30, %v403, 0.0
  %v407 = vrot.slane %v405, 5
  %v409 = vadd.f32 %v401, %v407
  %410 = vrot.lane.b32.xlu0 %v391, 7
  %v411 = vpop.permute.xlu0 %410
  %v413 = vsel %vm35, %v411, 0.0
  %v415 = vrot.slane %v413, 6
  %v417 = vadd.f32 %v409, %v415
  %418 = vrot.lane.b32.xlu0 %v391, 1
  %v419 = vpop.permute.xlu0 %418
  %v421 = vsel %vm40, %v419, 0.0
  %v423 = vrot.slane %v421, 7
  %v425 = vadd.f32 %v417, %v423
  %426 = vrot.lane.b32.xlu0 %v391, 127
  %v427 = vpop.permute.xlu0 %426
  %v429 = vsel %vm42, %v427, 0.0
  %v431 = vrot.slane %v429, 1
  %v433 = vadd.f32 %v425, %v431
  %434 = vrot.lane.b32.xlu0 %v391, 121
  %v435 = vpop.permute.xlu0 %434
  %v437 = vsel %vm48, %v435, 0.0
  %v439 = vrot.slane %v437, 2
  %v441 = vadd.f32 %v433, %v439
  %442 = vrot.lane.b32.xlu0 %v391, 120
  %v443 = vpop.permute.xlu0 %442
  %v445 = vsel %vm50, %v443, 0.0
  %v447 = vrot.slane %v445, 3
  %v449 = vadd.f32 %v441, %v447
  %451 = vrot.lane.b32.xlu0 %v392, 119
  %v452 = vpop.permute.xlu0 %451
  %v454 = vsel %vm52, %v452, 0.0
  %v456 = vrot.slane %v454, 4
  %v458 = vadd.f32 %v449, %v456
  %v459 = vadd.f32 %v458, %v257
  %v460 = vxor.u32 %v459, 2147483648
  %v461 = vmul.f32 %v460, 1.442695
  %v462 = vpow.pop %v461
  %v463 = vadd.f32 %v462, 1.0
  %v464 = vrcp.pop %v463
  %v465 = vmul.f32 1.0, %v464
  %466 = vst [vmem:[%s3 - $0x3] sm:$0x10] %v465
  // Predicated region
  $region14: #{color_head_forward.1} parent=0 // pred_check
    _
  $region15: #{color_head_forward.1} parent=0 // pred_check_branch
    %468 = sbr.rel (0) target = $region17
  $region16: #{color_head_forward.1} parent=0 // pred_region
    _
  $region17: #{color_head_forward.1} parent=0 // pred_fallthru
    _
  // Predicated region
  $region18: #{color_head_forward.1} parent=0 // pred_check
    _
  $region19: #{color_head_forward.1} parent=0 // pred_check_branch
    %470 = sbr.rel (0) target = $region21
  $region20: #{color_head_forward.1} parent=0 // pred_region
    _
  $region21: #{color_head_forward.1} parent=0 // pred_fallthru
    _

</llo_original>
